<compile_context>
chip_gen: v7x
topology: tpu7x:2x2x1
jax: 0.10.0
libtpu: 0.0.40
codegen_flags: <defaults>
</compile_context>

<pallas_src>
import math

import jax
import jax.numpy as jnp
from jax import lax
from jax.experimental import pallas as pl
from jax.experimental.pallas import tpu as pltpu


def _interp_matrix(out_size: int, in_size: int, align_corners: bool) -> jnp.ndarray:
    """Dense 1-D bilinear interpolation matrix of shape (out_size, in_size), f32."""
    out_idx = jnp.arange(out_size, dtype=jnp.float32)
    if align_corners:
        if out_size > 1:
            src = out_idx * (in_size - 1) / (out_size - 1)
        else:
            # PyTorch uses src = 0 for the degenerate 1-pixel output.
            src = jnp.zeros((out_size,), jnp.float32)
    else:
        # PyTorch align_corners=False: half-pixel centers, clamped.
        src = (out_idx + 0.5) * (in_size / out_size) - 0.5
    src = jnp.clip(src, 0.0, float(in_size - 1))
    i0 = jnp.floor(src).astype(jnp.int32)
    i1 = jnp.minimum(i0 + 1, in_size - 1)
    w1 = src - i0.astype(jnp.float32)
    w0 = 1.0 - w1
    rows = jnp.arange(out_size)
    W = jnp.zeros((out_size, in_size), jnp.float32)
    W = W.at[rows, i0].add(w0)
    W = W.at[rows, i1].add(w1)
    return W


def _round_up(v, m):
    return ((v + m - 1) // m) * m


def _vmem_capacity_bytes():
    cap = 64 * 1024 * 1024  # conservative fallback (v7x per-TC VMEM)
    try:
        info = pltpu.get_tpu_info()
        cap = int(getattr(info, "vmem_capacity_bytes", cap))
    except Exception:
        pass
    return cap


def _plane_footprint_bytes(B, H_in, W_in, H_out, W_out, x_itemsize):
    """Conservative per-grid-step VMEM footprint for a plane batch of size B."""
    sub = 8 if x_itemsize >= 4 else (16 if x_itemsize == 2 else 32)
    hi, wi = _round_up(H_in, sub), _round_up(W_in, 128)
    ho, wo = _round_up(H_out, sub), _round_up(W_out, 128)
    x_blk = 2 * B * hi * wi * x_itemsize                      # double-buffered input
    o_blk = 2 * B * ho * wo * x_itemsize                      # double-buffered output
    # f32 interpolation weights (constant index_map; counted double-buffered).
    w_blk = 2 * (_round_up(H_out, 8) * _round_up(H_in, 128)
                 + _round_up(W_in, 8) * _round_up(W_out, 128)) * 4
    # In-kernel f32 working set: cast plane, intermediate, pre-cast result;
    # x2 headroom for pipelining / register pressure.
    hi32, wi32 = _round_up(H_in, 8), _round_up(W_in, 128)
    ho32, wo32 = _round_up(H_out, 8), _round_up(W_out, 128)
    work = 2 * (hi32 * wi32 + ho32 * wi32 + hi32 * wo32 + ho32 * wo32) * 4
    return x_blk + o_blk + w_blk + work


def _choose_plane_batch(P, H_in, W_in, H_out, W_out, x_itemsize, budget):
    divisors = [d for d in range(1, P + 1) if P % d == 0]
    fits = [d for d in divisors
            if _plane_footprint_bytes(d, H_in, W_in, H_out, W_out,
                                      x_itemsize) <= budget]
    if not fits:
        fits = [1]
    # Prefer an even number of >= 4 grid steps (v7x: two TensorCores, each with
    # >= 2 pipelined steps), then >= 2 steps, else the largest batch that fits.
    for pred in (lambda d: (P // d) >= 4 and (P // d) % 2 == 0,
                 lambda d: (P // d) >= 2):
        pref = [d for d in fits if pred(d)]
        if pref:
            return max(pref)
    return max(fits)


def _make_upsample_kernel(B, h_first):
    def kernel(x_ref, wh_ref, wwt_ref, o_ref):
        # x_ref:   (B, H_in,  W_in)   -- B image planes
        # wh_ref:  (H_out, H_in)  f32 -- H interpolation
        # wwt_ref: (W_in,  W_out) f32 -- W interpolation (transposed)
        # o_ref:   (B, H_out, W_out)
        wh = wh_ref[...]
        wwt = wwt_ref[...]

        def interp_one(p):
            xs = x_ref[p].astype(jnp.float32)                 # (H_in, W_in), f32
            if h_first:
                t = jnp.dot(wh, xs, preferred_element_type=jnp.float32)
                out = jnp.dot(t, wwt, preferred_element_type=jnp.float32)
            else:
                t = jnp.dot(xs, wwt, preferred_element_type=jnp.float32)
                out = jnp.dot(wh, t, preferred_element_type=jnp.float32)
            o_ref[p] = out.astype(o_ref.dtype)

        if B <= 8:
            for p in range(B):
                interp_one(p)
        else:
            def loop_body(p, carry):
                interp_one(p)
                return carry
            lax.fori_loop(0, B, loop_body, 0)

    return kernel


def upsample_bilinear(x, size=None, scale_factor=None, mode="bilinear",
                      align_corners=False):
    """Pallas equivalent of Upsample(...)(x) for 4-D NCHW inputs."""
    if mode != "bilinear":
        # TODO(synk): only the module's configured 'bilinear' mode is implemented.
        raise NotImplementedError(f"mode={mode!r} not implemented")
    if x.ndim != 4:
        raise ValueError("expected 4-D NCHW input")

    N, C, H_in, W_in = x.shape
    if size is not None:
        H_out, W_out = (size, size) if isinstance(size, int) else tuple(size)
    else:
        sf = scale_factor
        sfh, sfw = (sf, sf) if not isinstance(sf, (tuple, list)) else tuple(sf)
        # PyTorch: output_size = floor(input_size * scale_factor)
        H_out = int(math.floor(H_in * float(sfh)))
        W_out = int(math.floor(W_in * float(sfw)))
        # TODO(synk): for non-integer scale factors PyTorch (recompute_scale_factor
        # =False) uses the given scale directly for source indices; we use
        # in_size/out_size, which is identical for integer scales.

    P = N * C
    x_itemsize = jnp.dtype(x.dtype).itemsize

    vmem_cap = _vmem_capacity_bytes()
    budget = int(vmem_cap * 0.45)            # ~57 MiB on 128 MiB parts, ~29 MiB on v7x
    B = _choose_plane_batch(P, H_in, W_in, H_out, W_out, x_itemsize, budget)
    num_blocks = P // B
    footprint = _plane_footprint_bytes(B, H_in, W_in, H_out, W_out, x_itemsize)
    vmem_limit = int(min(vmem_cap * 0.9,
                         max(footprint * 5 // 4, 32 * 1024 * 1024)))

    # Pick the contraction order with fewer FLOPs (matters for anisotropic shapes).
    flops_hfirst = 2 * H_out * W_in * (H_in + W_out)
    flops_wfirst = 2 * H_in * W_out * (W_in + H_out)
    h_first = flops_hfirst <= flops_wfirst

    Wh = _interp_matrix(H_out, H_in, align_corners)           # (H_out, H_in) f32
    WwT = _interp_matrix(W_out, W_in, align_corners).T        # (W_in, W_out) f32

    x3d = x.reshape(P, H_in, W_in)                            # free reshape

    flops = P * min(flops_hfirst, flops_wfirst)
    bytes_accessed = ((x3d.size + P * H_out * W_out) * x_itemsize
                      + (Wh.size + WwT.size) * 4)

    out3d = pl.pallas_call(
        _make_upsample_kernel(B, h_first),
        out_shape=jax.ShapeDtypeStruct((P, H_out, W_out), x.dtype),
        grid_spec=pltpu.PrefetchScalarGridSpec(
            num_scalar_prefetch=0,
            grid=(num_blocks,),
            in_specs=[
                pl.BlockSpec((B, H_in, W_in), lambda i: (i, 0, 0)),
                pl.BlockSpec((H_out, H_in), lambda i: (0, 0)),
                pl.BlockSpec((W_in, W_out), lambda i: (0, 0)),
            ],
            out_specs=pl.BlockSpec((B, H_out, W_out), lambda i: (i, 0, 0)),
        ),
        compiler_params=pltpu.CompilerParams(
            dimension_semantics=("parallel",),
            vmem_limit_bytes=vmem_limit),
        cost_estimate=pl.CostEstimate(
            flops=int(flops), transcendentals=0,
            bytes_accessed=int(bytes_accessed)),
    )(x3d, Wh, WwT)

    # TODO(synk): when W_out < 128 the output store is a masked partial vst;
    # packing several planes along the lane axis would make it lane-dense.
    # (P, H_out, W_out) -> (N, C, H_out, W_out) is a free reshape (no transpose).
    return out3d.reshape(N, C, H_out, W_out)


def _reference(x, Wh, WwT):
    # Pure-JAX reference of the same separable-bilinear formulation (f32 math).
    return jnp.einsum("oh,nchw,wp->ncop", Wh, x.astype(jnp.float32),
                      WwT).astype(x.dtype)


if __name__ == "__main__":
    key, key2 = jax.random.split(jax.random.PRNGKey(0))

    # Case 1: the module's typical use — scale_factor=2, align_corners=False.
    N, C, H, W = 2, 4, 16, 16
    scale = 2
    x = jax.random.normal(key, (N, C, H, W), dtype=jnp.float32)
    out = upsample_bilinear(x, scale_factor=scale, align_corners=False)
    out = jax.block_until_ready(out)
    Wh = _interp_matrix(H * scale, H, False)
    WwT = _interp_matrix(W * scale, W, False).T
    ref = _reference(x, Wh, WwT)
    assert out.shape == (N, C, H * scale, W * scale)
    assert jnp.max(jnp.abs(out - ref)) < 1e-4

    # Case 2: explicit anisotropic `size` (exercises the contraction-order pick).
    x2 = jax.random.normal(key2, (1, 3, 8, 24), dtype=jnp.float32)
    out2 = upsample_bilinear(x2, size=(20, 36), align_corners=False)
    out2 = jax.block_until_ready(out2)
    Wh2 = _interp_matrix(20, 8, False)
    WwT2 = _interp_matrix(36, 24, False).T
    ref2 = _reference(x2, Wh2, WwT2)
    assert out2.shape == (1, 3, 20, 36)
    assert jnp.max(jnp.abs(out2 - ref2)) < 1e-4

    print("KERNEL_OK")
</pallas_src>

<mosaic_0001>
module attributes {stable_mosaic.version = 11 : i64} {
  func.func @kernel(%arg0: i32, %arg1: memref<2x16x16xf32, #tpu.memory_space<vmem>>, %arg2: memref<32x16xf32, #tpu.memory_space<vmem>>, %arg3: memref<16x32xf32, #tpu.memory_space<vmem>>, %arg4: memref<2x32x32xf32, #tpu.memory_space<vmem>>) attributes {dimension_semantics = [#tpu.dimension_semantics<parallel>], iteration_bounds = array<i64: 4>, scalar_prefetch = 0 : i64, scratch_operands = 0 : i64, tpu.core_type = #tpu.core_type<tc>, window_params = [{transform_indices = @transform_0, window_bounds = array<i64: 2, 16, 16>}, {pipeline_mode = #tpu.pipeline_mode<synchronous>, transform_indices = @transform_1, window_bounds = array<i64: 32, 16>}, {pipeline_mode = #tpu.pipeline_mode<synchronous>, transform_indices = @transform_2, window_bounds = array<i64: 16, 32>}, {transform_indices = @transform_3, window_bounds = array<i64: 2, 32, 32>}]} {
    %c0 = arith.constant 0 : index
    %c0_0 = arith.constant 0 : index
    %0 = vector.load %arg2[%c0, %c0_0] : memref<32x16xf32, #tpu.memory_space<vmem>>, vector<32x16xf32>
    %c0_1 = arith.constant 0 : index
    %c0_2 = arith.constant 0 : index
    %1 = vector.load %arg3[%c0_1, %c0_2] : memref<16x32xf32, #tpu.memory_space<vmem>>, vector<16x32xf32>
    %c0_3 = arith.constant 0 : index
    %c0_4 = arith.constant 0 : index
    %c0_5 = arith.constant 0 : index
    %2 = vector.load %arg1[%c0_3, %c0_4, %c0_5] : memref<2x16x16xf32, #tpu.memory_space<vmem>>, vector<1x16x16xf32>
    %3 = vector.shape_cast %2 : vector<1x16x16xf32> to vector<16x16xf32>
    %cst = arith.constant dense<0.000000e+00> : vector<32x16xf32>
    %4 = tpu.matmul %0, %3, %cst {dimension_numbers = #tpu.dot_dimension_numbers<[1], [0], [0], [1], [0, 0, 1, 1], [], []>} : vector<32x16xf32>, vector<16x16xf32>, vector<32x16xf32> -> vector<32x16xf32>
    %cst_6 = arith.constant dense<0.000000e+00> : vector<32x32xf32>
    %5 = tpu.matmul %4, %1, %cst_6 {dimension_numbers = #tpu.dot_dimension_numbers<[1], [0], [0], [1], [0, 0, 1, 1], [], []>} : vector<32x16xf32>, vector<16x32xf32>, vector<32x32xf32> -> vector<32x32xf32>
    %c0_7 = arith.constant 0 : index
    %c0_8 = arith.constant 0 : index
    %c0_9 = arith.constant 0 : index
    %6 = vector.load %arg4[%c0_7, %c0_8, %c0_9] : memref<2x32x32xf32, #tpu.memory_space<vmem>>, vector<1x32x32xf32>
    %7 = vector.shape_cast %6 : vector<1x32x32xf32> to vector<32x32xf32>
    %8 = vector.shape_cast %5 : vector<32x32xf32> to vector<1x32x32xf32>
    tpu.vector_store %arg4[%c0_7, %c0_8, %c0_9], %8 {strides = array<i32>} : memref<2x32x32xf32, #tpu.memory_space<vmem>>, vector<1x32x32xf32>,
    %c1 = arith.constant 1 : index
    %c0_10 = arith.constant 0 : index
    %c0_11 = arith.constant 0 : index
    %9 = vector.load %arg1[%c1, %c0_10, %c0_11] : memref<2x16x16xf32, #tpu.memory_space<vmem>>, vector<1x16x16xf32>
    %10 = vector.shape_cast %9 : vector<1x16x16xf32> to vector<16x16xf32>
    %cst_12 = arith.constant dense<0.000000e+00> : vector<32x16xf32>
    %11 = tpu.matmul %0, %10, %cst_12 {dimension_numbers = #tpu.dot_dimension_numbers<[1], [0], [0], [1], [0, 0, 1, 1], [], []>} : vector<32x16xf32>, vector<16x16xf32>, vector<32x16xf32> -> vector<32x16xf32>
    %cst_13 = arith.constant dense<0.000000e+00> : vector<32x32xf32>
    %12 = tpu.matmul %11, %1, %cst_13 {dimension_numbers = #tpu.dot_dimension_numbers<[1], [0], [0], [1], [0, 0, 1, 1], [], []>} : vector<32x16xf32>, vector<16x32xf32>, vector<32x32xf32> -> vector<32x32xf32>
    %c1_14 = arith.constant 1 : index
    %c0_15 = arith.constant 0 : index
    %c0_16 = arith.constant 0 : index
    %13 = vector.load %arg4[%c1_14, %c0_15, %c0_16] : memref<2x32x32xf32, #tpu.memory_space<vmem>>, vector<1x32x32xf32>
    %14 = vector.shape_cast %13 : vector<1x32x32xf32> to vector<32x32xf32>
    %15 = vector.shape_cast %12 : vector<32x32xf32> to vector<1x32x32xf32>
    tpu.vector_store %arg4[%c1_14, %c0_15, %c0_16], %15 {strides = array<i32>} : memref<2x32x32xf32, #tpu.memory_space<vmem>>, vector<1x32x32xf32>,
    return
  }
  func.func @transform_0(%arg0: i32) -> (i32, i32, i32) {
    %c0_i32 = arith.constant 0 : i32
    %c0_i32_0 = arith.constant 0 : i32
    %c0_i32_1 = arith.constant 0 : i32
    return %arg0, %c0_i32, %c0_i32_0 : i32, i32, i32
  }
  func.func @transform_1(%arg0: i32) -> (i32, i32) {
    %c0_i32 = arith.constant 0 : i32
    %c0_i32_0 = arith.constant 0 : i32
    %c0_i32_1 = arith.constant 0 : i32
    return %c0_i32, %c0_i32_0 : i32, i32
  }
  func.func @transform_2(%arg0: i32) -> (i32, i32) {
    %c0_i32 = arith.constant 0 : i32
    %c0_i32_0 = arith.constant 0 : i32
    %c0_i32_1 = arith.constant 0 : i32
    return %c0_i32, %c0_i32_0 : i32, i32
  }
  func.func @transform_3(%arg0: i32) -> (i32, i32, i32) {
    %c0_i32 = arith.constant 0 : i32
    %c0_i32_0 = arith.constant 0 : i32
    %c0_i32_1 = arith.constant 0 : i32
    return %arg0, %c0_i32, %c0_i32_0 : i32, i32, i32
  }
}

</mosaic_0001>

<llo_original>
// kernel: tpu_custom_call.1
$region0: #{tpu_custom_call.1}
  #allocation0 [shape = 'u32[]', space=smem, size = 0x4, offset = 0x4, fixed_abs, tag = 'smem constant byte address 0x4 - core index']
  #allocation1 [shape = 'u32[144,128]{1,0:T(1,128)}', space=vmem, size = 0x12000, scoped, tag = 'internal scratch']
  %s0 = inlined_call_operand.hbm [shape: f32[8,16,16], index: 0, kind: input, shape index: {}]
  %s1 = inlined_call_operand.vmem [shape: f32[32,16], index: 1, kind: input, shape index: {}]
  %s2 = inlined_call_operand.vmem [shape: f32[16,32], index: 2, kind: input, shape index: {}]
  %s3 = inlined_call_operand.hbm [shape: f32[8,32,32], index: 3, kind: output, shape index: {}]
  %s4 = sld [smem:[#allocation0]]
  $region49: #{tpu_custom_call.1} parent=0
    _
  %s6 = ssub.s32 1, %s4
  %s7 = scalar_select 0, %s6, %s4
  $region1: #{tpu_custom_call.1} parent=0
    #allocation2 [shape = 'u8[32768]{0}', space=vmem, size = 0x8000, scoped, tag = 'input window, operand 0']
    #allocation3 [shape = 's32[2]{0}', space=sflag, size = 0x8, scoped, tag = 'scoped memory for tpu_custom_call.1']
    #allocation4 [shape = 's32[2]{0}', space=sflag, size = 0x8, scoped, tag = 'scoped memory for tpu_custom_call.1']
    #allocation5 [shape = 'u8[65536]{0}', space=vmem, size = 0x10000, scoped, tag = 'output window, operand 0']
    %8 = vsyncpa [#allocation3], 0
    %s9 = scalar_lea.sflag [#allocation3], 1
    %10 = vsyncpa %s9, 0
    %11 = vsyncpa [#allocation4], 0
    %s12 = scalar_lea.sflag [#allocation4], 1
    %13 = vsyncpa %s12, 0
    loop: start=0, step=1, limit=6
    $region2: #{tpu_custom_call.1} parent=1 // loop_pre_header
      _
    $region3: #{tpu_custom_call.1} parent=1 // loop_header
      %s15 = sphi 0, %s19
      %p16 = scmp.ge.s32.totalorder %s15, 6
      %s25 = sphi 0, %s27
      %s28 = sphi 0, %s25
      %s29 = sphi 0, %s28
      %s45 = sphi 0, %s29
      %s49 = sphi 0, %s49
      %s51 = sphi 0, %s49
      %s52 = sphi 0, %s51
      %s66 = sphi 0, %s52
      %s70 = sphi 0, %s70
      %s72 = sphi 0, %s70
      %s73 = sphi 0, %s72
      %s87 = sphi 0, %s73
      %s93 = sphi 0, %s95
      %s96 = sphi 0, %s93
      %s97 = sphi 0, %s96
      %s113 = sphi 0, %s97
    $region4: #{tpu_custom_call.1} parent=1 // loop_header_branch
      %18 = sbr.rel (%p16) target = $region8
    $region5: #{tpu_custom_call.1} parent=1 // loop_body
      %s20 = ssub.s32 %s15, 1
      %s21 = ssub.s32 %s15, 2
      %s22 = sadd.s32 %s15, 1
      %s23 = ssub.s32 %s15, %s22
      %p24 = scmp.eq.s32.totalorder %s23, 0
      %s26 = sadd.s32 %s25, 1
      %s27 = scalar_select %p24, %s25, %s26
      %p30 = pneg %p24
      %p31 = scmp.eq.s32.totalorder %s15, 3
      %p32 = por %p30, %p31
      %p33 = scmp.ne.s32.totalorder %s25, %s28
      %p34 = scmp.eq.s32.totalorder %s15, 0
      %p35 = por %p33, %p34
      %p36 = scmp.ne.s32.totalorder %s25, %s28
      %p37 = scmp.eq.s32.totalorder %s20, 3
      %p38 = por %p36, %p37
      %p39 = scmp.ne.s32.totalorder %s28, %s29
      %p40 = scmp.eq.s32.totalorder %s20, 0
      %p41 = por %p39, %p40
      %p42 = scmp.ne.s32.totalorder %s28, %s29
      %p43 = scmp.eq.s32.totalorder %s21, 3
      %p44 = por %p42, %p43
      %p46 = scmp.ne.s32.totalorder %s29, %s45
      %p47 = scmp.eq.s32.totalorder %s21, 0
      %p48 = por %p46, %p47
      %s50 = sadd.s32 %s49, 1
      %p53 = scmp.eq.s32.totalorder %s15, 3
      %p54 = scmp.ne.s32.totalorder %s49, %s51
      %p55 = scmp.eq.s32.totalorder %s15, 0
      %p56 = por %p54, %p55
      %p57 = scmp.ne.s32.totalorder %s49, %s51
      %p58 = scmp.eq.s32.totalorder %s20, 3
      %p59 = por %p57, %p58
      %p60 = scmp.ne.s32.totalorder %s51, %s52
      %p61 = scmp.eq.s32.totalorder %s20, 0
      %p62 = por %p60, %p61
      %p63 = scmp.ne.s32.totalorder %s51, %s52
      %p64 = scmp.eq.s32.totalorder %s21, 3
      %p65 = por %p63, %p64
      %p67 = scmp.ne.s32.totalorder %s52, %s66
      %p68 = scmp.eq.s32.totalorder %s21, 0
      %p69 = por %p67, %p68
      %s71 = sadd.s32 %s70, 1
      %p74 = scmp.eq.s32.totalorder %s15, 3
      %p75 = scmp.ne.s32.totalorder %s70, %s72
      %p76 = scmp.eq.s32.totalorder %s15, 0
      %p77 = por %p75, %p76
      %p78 = scmp.ne.s32.totalorder %s70, %s72
      %p79 = scmp.eq.s32.totalorder %s20, 3
      %p80 = por %p78, %p79
      %p81 = scmp.ne.s32.totalorder %s72, %s73
      %p82 = scmp.eq.s32.totalorder %s20, 0
      %p83 = por %p81, %p82
      %p84 = scmp.ne.s32.totalorder %s72, %s73
      %p85 = scmp.eq.s32.totalorder %s21, 3
      %p86 = por %p84, %p85
      %p88 = scmp.ne.s32.totalorder %s73, %s87
      %p89 = scmp.eq.s32.totalorder %s21, 0
      %p90 = por %p88, %p89
      %s91 = ssub.s32 %s15, %s22
      %p92 = scmp.eq.s32.totalorder %s91, 0
      %s94 = sadd.s32 %s93, 1
      %s95 = scalar_select %p92, %s93, %s94
      %p98 = pneg %p92
      %p99 = scmp.eq.s32.totalorder %s15, 3
      %p100 = por %p98, %p99
      %p101 = scmp.ne.s32.totalorder %s93, %s96
      %p102 = scmp.eq.s32.totalorder %s15, 0
      %p103 = por %p101, %p102
      %p104 = scmp.ne.s32.totalorder %s93, %s96
      %p105 = scmp.eq.s32.totalorder %s20, 3
      %p106 = por %p104, %p105
      %p107 = scmp.ne.s32.totalorder %s96, %s97
      %p108 = scmp.eq.s32.totalorder %s20, 0
      %p109 = por %p107, %p108
      %p110 = scmp.ne.s32.totalorder %s96, %s97
      %p111 = scmp.eq.s32.totalorder %s21, 3
      %p112 = por %p110, %p111
      %p114 = scmp.ne.s32.totalorder %s97, %s113
      %p115 = scmp.eq.s32.totalorder %s21, 0
      %p116 = por %p114, %p115
      %p117 = scmp.le.s32.totalorder 1, %s15
      %p118 = scmp.lt.s32.totalorder %s15, 5
      %p119 = pnand %p117, %p118
      %p120 = pneg %p119
      // Predicated region
      $region9: #{tpu_custom_call.1} parent=5 // pred_check
        _
      $region10: #{tpu_custom_call.1} parent=5 // pred_check_branch
        %122 = sbr.rel (%p119) target = $region12
      $region11: #{tpu_custom_call.1} parent=5 // pred_region
        %s123 = ssub.s32 %s15, 1
        // Predicated region
        $region13: #{tpu_custom_call.1} parent=11 // pred_check
          %p124 = pneg %p62
        $region14: #{tpu_custom_call.1} parent=11 // pred_check_branch
          %126 = sbr.rel (%p124) target = $region16
        $region15: #{tpu_custom_call.1} parent=11 // pred_region
          _
        $region16: #{tpu_custom_call.1} parent=11 // pred_fallthru
          _
        // Predicated region
        $region17: #{tpu_custom_call.1} parent=11 // pred_check
          %p127 = pneg %p83
        $region18: #{tpu_custom_call.1} parent=11 // pred_check_branch
          %129 = sbr.rel (%p127) target = $region20
        $region19: #{tpu_custom_call.1} parent=11 // pred_region
          _
        $region20: #{tpu_custom_call.1} parent=11 // pred_fallthru
          _
      $region12: #{tpu_custom_call.1} parent=5 // pred_fallthru
        _
      %p130 = scmp.lt.s32.totalorder %s15, 4
      // Predicated region
      $region21: #{tpu_custom_call.1} parent=5 // pred_check
        %p131 = pneg %p130
      $region22: #{tpu_custom_call.1} parent=5 // pred_check_branch
        %133 = sbr.rel (%p131) target = $region24
      $region23: #{tpu_custom_call.1} parent=5 // pred_region
        // Predicated region
        $region25: #{tpu_custom_call.1} parent=23 // pred_check
          %p134 = pneg %p35
        $region26: #{tpu_custom_call.1} parent=23 // pred_check_branch
          %136 = sbr.rel (%p134) target = $region28
        $region27: #{tpu_custom_call.1} parent=23 // pred_region
          %s137 = sand.u32 %s25, 1
          %s138 = scalar_lea.sflag [#allocation3], %s137
          %s139 = sand.u32 %s25, 1
          %s140 = smul.addr %s139, 32
          %s141 = scalar_lea.vmem [#allocation2], %s140
          %s142 = smul.u32 2, %s15
          %s144 = ssub.s32 512, 512
          %145 = vsyncadd %s138, %s144
          %s146 = smul.addr %s142, 2
          %s147 = smul.addr %s146, 128
          %s148 = scalar_lea.hbm %s0, %s147
          %s149 = sshll.u32 %s141, 4
          %s150 = int_to_ptr.vmem [resolvable:$true] %s149
          %155 = dma.hbm_to_vmem [thread:$0]  %s148, 512, %s150, %s138, 128, 128, 8
        $region28: #{tpu_custom_call.1} parent=23 // pred_fallthru
          _
      $region24: #{tpu_custom_call.1} parent=5 // pred_fallthru
        _
      %p156 = scmp.le.s32.totalorder 1, %s15
      %p157 = scmp.lt.s32.totalorder %s15, 5
      %p158 = pnand %p156, %p157
      %p159 = pneg %p158
      // Predicated region
      $region29: #{tpu_custom_call.1} parent=5 // pred_check
        _
      $region30: #{tpu_custom_call.1} parent=5 // pred_check_branch
        %161 = sbr.rel (%p158) target = $region32
      $region31: #{tpu_custom_call.1} parent=5 // pred_region
        %s162 = ssub.s32 %s15, 1
        %s163 = sand.u32 %s28, 1
        %s164 = scalar_lea.sflag [#allocation3], %s163
        %s165 = sand.u32 %s28, 1
        %s166 = smul.addr %s165, 32
        %s167 = scalar_lea.vmem [#allocation2], %s166
        // Predicated region
        $region33: #{tpu_custom_call.1} parent=31 // pred_check
          %p168 = pneg %p41
        $region34: #{tpu_custom_call.1} parent=31 // pred_check_branch
          %170 = sbr.rel (%p168) target = $region36
        $region35: #{tpu_custom_call.1} parent=31 // pred_region
          %171 = dma.done %s164, 512
        $region36: #{tpu_custom_call.1} parent=31 // pred_fallthru
          _
        %s172 = sand.u32 %s28, 1
        %s173 = scalar_lea.sflag [#allocation3], %s172
        %s174 = sand.u32 %s28, 1
        %s175 = smul.addr %s174, 32
        %s176 = scalar_lea.vmem [#allocation2], %s175
        %p177 = pneg %p41
        %p178 = pneg %p38
        %p179 = pneg %p62
        %p180 = pneg %p59
        %p181 = pneg %p83
        %p182 = pneg %p80
        %p183 = pneg %p109
        %p184 = pneg %p106
        %s185 = sand.u32 %s96, 1
        %s186 = scalar_lea.sflag [#allocation4], %s185
        %s187 = sand.u32 %s96, 1
        %s188 = smul.addr %s187, 64
        %s189 = scalar_lea.vmem [#allocation5], %s188
        %s190 = smul.u32 2, %s20
        %s191 = smul.u32 2, %s20
        %v192 = vld [vmem:[%s1] sm:$0xff]
        %v193 = vld [vmem:[%s1 + $0x8] sm:$0xff]
        %v194 = vld [vmem:[%s1 + $0x10] sm:$0xff]
        %v195 = vld [vmem:[%s1 + $0x18] sm:$0xff]
        %v196 = vld [vmem:[%s2] sm:$0xff]
        %v197 = vld [vmem:[%s2 + $0x8] sm:$0xff]
        %v198 = vld [vmem:[%s167] sm:$0xff]
        %v199 = vld [vmem:[%s167 + $0x8] sm:$0xff]
        %vm200 = vcmask 130048
        %v202 = vsel %vm200, %v192, 0
        %v205 = vsel %vm200, %v193, 0
        %v208 = vsel %vm200, %v194, 0
        %v211 = vsel %vm200, %v195, 0
        %213 = vmatprep.subr.mxu0 0.0
        %214 = vmatpush1.msra.mxu0 %v198
        %215 = vmatprep.subr.mxu0 0.0
        %216 = vmatpush1.msra.mxu0 %v199
        %217 = vmatprep.subr.mxu0 0.0
        %218 = vmatpush1.msra.mxu0 0.0
        %219 = vmatprep.subr.mxu0 0.0
        %220 = vmatpush1.msra.mxu0 0.0
        %221 = vmatprep.subr.mxu0 0.0
        %222 = vmatpush1.msra.mxu0 0.0
        %223 = vmatprep.subr.mxu0 0.0
        %224 = vmatpush1.msra.mxu0 0.0
        %225 = vmatprep.subr.mxu0 0.0
        %226 = vmatpush1.msra.mxu0 0.0
        %227 = vmatprep.subr.mxu0 0.0
        %228 = vmatpush1.msra.mxu0 0.0
        %229 = vmatprep.subr.mxu0 0.0
        %230 = vmatpush1.msra.mxu0 0.0
        %231 = vmatprep.subr.mxu0 0.0
        %232 = vmatpush1.msra.mxu0 0.0
        %233 = vmatprep.subr.mxu0 0.0
        %234 = vmatpush1.msra.mxu0 0.0
        %235 = vmatprep.subr.mxu0 0.0
        %236 = vmatpush1.msra.mxu0 0.0
        %237 = vmatprep.subr.mxu0 0.0
        %238 = vmatpush1.msra.mxu0 0.0
        %239 = vmatprep.subr.mxu0 0.0
        %240 = vmatpush1.msra.mxu0 0.0
        %241 = vmatprep.subr.mxu0 0.0
        %242 = vmatpush1.msra.mxu0 0.0
        %243 = vmatprep.subr.mxu0 0.0
        %244 = vmatpush1.msra.mxu0 0.0
        %245 = vmatprep.subr.mxu0 0.0
        %246 = vmatpush1.msra.mxu0 0.0
        %247 = vmatprep.subr.mxu0 0.0
        %248 = vmatpush1.msra.mxu0 0.0
        %249 = vmatprep.subr.mxu0 0.0
        %250 = vmatpush1.msra.mxu0 0.0
        %251 = vmatprep.subr.mxu0 0.0
        %252 = vmatpush1.msra.mxu0 0.0
        %253 = vmatprep.subr.mxu0 0.0
        %254 = vmatpush1.msra.mxu0 0.0
        %255 = vmatprep.subr.mxu0 0.0
        %256 = vmatpush1.msra.mxu0 0.0
        %257 = vmatprep.subr.mxu0 0.0
        %258 = vmatpush1.msra.mxu0 0.0
        %259 = vmatprep.subr.mxu0 0.0
        %260 = vmatpush1.msra.mxu0 0.0
        %261 = vmatprep.subr.mxu0 0.0
        %262 = vmatpush1.msra.mxu0 0.0
        %263 = vmatprep.subr.mxu0 0.0
        %264 = vmatpush1.msra.mxu0 0.0
        %265 = vmatprep.subr.mxu0 0.0
        %266 = vmatpush1.msra.mxu0 0.0
        %267 = vmatprep.subr.mxu0 0.0
        %268 = vmatpush1.msra.mxu0 0.0
        %269 = vmatprep.subr.mxu0 0.0
        %270 = vmatpush1.msra.mxu0 0.0
        %271 = vmatprep.subr.mxu0 0.0
        %272 = vmatpush1.msra.mxu0 0.0
        %273 = vmatprep.subr.mxu0 0.0
        %274 = vmatpush1.msra.mxu0 0.0
        %275 = vmatprep.subr.mxu0 0.0
        %276 = vmatpush1.msra.mxu0 0.0
        %277 = vmatprep.mubr.f32.mxu0 0.0
        %278 = vmatmul.mubr.f32.gmra.mrb[0].mxu0 %v202
        %v279 = vpop.f32.mrb[0].mxu0
        %v280 = vadd.f32 0.0, %v279
        %v281 = vpop.f32.mrb[0].mxu0
        %282 = vmatprep.mubr.f32.mxu0 0.0
        %283 = vmatmul.mubr.f32.gmra.mrb[0].mxu0 %v205
        %v284 = vpop.f32.mrb[0].mxu0
        %v285 = vadd.f32 0.0, %v284
        %v286 = vpop.f32.mrb[0].mxu0
        %287 = vmatprep.mubr.f32.mxu0 0.0
        %288 = vmatmul.mubr.f32.gmra.mrb[0].mxu0 %v208
        %v289 = vpop.f32.mrb[0].mxu0
        %v290 = vadd.f32 0.0, %v289
        %v291 = vpop.f32.mrb[0].mxu0
        %292 = vmatprep.mubr.f32.mxu0 0.0
        %293 = vmatmul.mubr.f32.gmra.mrb[0].mxu0 %v211
        %v294 = vpop.f32.mrb[0].mxu0
        %v295 = vadd.f32 0.0, %v294
        %v296 = vpop.f32.mrb[0].mxu0
        %297 = vdwg.mxu0
        %v299 = vsel %vm200, %v280, 0
        %v302 = vsel %vm200, %v285, 0
        %v305 = vsel %vm200, %v290, 0
        %v308 = vsel %vm200, %v295, 0
        %310 = vmatprep.subr.mxu0 0.0
        %311 = vmatpush1.msra.mxu0 %v196
        %312 = vmatprep.subr.mxu0 0.0
        %313 = vmatpush1.msra.mxu0 %v197
        %314 = vmatprep.subr.mxu0 0.0
        %315 = vmatpush1.msra.mxu0 0.0
        %316 = vmatprep.subr.mxu0 0.0
        %317 = vmatpush1.msra.mxu0 0.0
        %318 = vmatprep.subr.mxu0 0.0
        %319 = vmatpush1.msra.mxu0 0.0
        %320 = vmatprep.subr.mxu0 0.0
        %321 = vmatpush1.msra.mxu0 0.0
        %322 = vmatprep.subr.mxu0 0.0
        %323 = vmatpush1.msra.mxu0 0.0
        %324 = vmatprep.subr.mxu0 0.0
        %325 = vmatpush1.msra.mxu0 0.0
        %326 = vmatprep.subr.mxu0 0.0
        %327 = vmatpush1.msra.mxu0 0.0
        %328 = vmatprep.subr.mxu0 0.0
        %329 = vmatpush1.msra.mxu0 0.0
        %330 = vmatprep.subr.mxu0 0.0
        %331 = vmatpush1.msra.mxu0 0.0
        %332 = vmatprep.subr.mxu0 0.0
        %333 = vmatpush1.msra.mxu0 0.0
        %334 = vmatprep.subr.mxu0 0.0
        %335 = vmatpush1.msra.mxu0 0.0
        %336 = vmatprep.subr.mxu0 0.0
        %337 = vmatpush1.msra.mxu0 0.0
        %338 = vmatprep.subr.mxu0 0.0
        %339 = vmatpush1.msra.mxu0 0.0
        %340 = vmatprep.subr.mxu0 0.0
        %341 = vmatpush1.msra.mxu0 0.0
        %342 = vmatprep.subr.mxu0 0.0
        %343 = vmatpush1.msra.mxu0 0.0
        %344 = vmatprep.subr.mxu0 0.0
        %345 = vmatpush1.msra.mxu0 0.0
        %346 = vmatprep.subr.mxu0 0.0
        %347 = vmatpush1.msra.mxu0 0.0
        %348 = vmatprep.subr.mxu0 0.0
        %349 = vmatpush1.msra.mxu0 0.0
        %350 = vmatprep.subr.mxu0 0.0
        %351 = vmatpush1.msra.mxu0 0.0
        %352 = vmatprep.subr.mxu0 0.0
        %353 = vmatpush1.msra.mxu0 0.0
        %354 = vmatprep.subr.mxu0 0.0
        %355 = vmatpush1.msra.mxu0 0.0
        %356 = vmatprep.subr.mxu0 0.0
        %357 = vmatpush1.msra.mxu0 0.0
        %358 = vmatprep.subr.mxu0 0.0
        %359 = vmatpush1.msra.mxu0 0.0
        %360 = vmatprep.subr.mxu0 0.0
        %361 = vmatpush1.msra.mxu0 0.0
        %362 = vmatprep.subr.mxu0 0.0
        %363 = vmatpush1.msra.mxu0 0.0
        %364 = vmatprep.subr.mxu0 0.0
        %365 = vmatpush1.msra.mxu0 0.0
        %366 = vmatprep.subr.mxu0 0.0
        %367 = vmatpush1.msra.mxu0 0.0
        %368 = vmatprep.subr.mxu0 0.0
        %369 = vmatpush1.msra.mxu0 0.0
        %370 = vmatprep.subr.mxu0 0.0
        %371 = vmatpush1.msra.mxu0 0.0
        %372 = vmatprep.subr.mxu0 0.0
        %373 = vmatpush1.msra.mxu0 0.0
        %374 = vmatprep.mubr.f32.mxu0 0.0
        %375 = vmatmul.mubr.f32.gmra.mrb[0].mxu0 %v299
        %v376 = vpop.f32.mrb[0].mxu0
        %v377 = vadd.f32 0.0, %v376
        %v378 = vpop.f32.mrb[0].mxu0
        %379 = vmatprep.mubr.f32.mxu0 0.0
        %380 = vmatmul.mubr.f32.gmra.mrb[0].mxu0 %v302
        %v381 = vpop.f32.mrb[0].mxu0
        %v382 = vadd.f32 0.0, %v381
        %v383 = vpop.f32.mrb[0].mxu0
        %384 = vmatprep.mubr.f32.mxu0 0.0
        %385 = vmatmul.mubr.f32.gmra.mrb[0].mxu0 %v305
        %v386 = vpop.f32.mrb[0].mxu0
        %v387 = vadd.f32 0.0, %v386
        %v388 = vpop.f32.mrb[0].mxu0
        %389 = vmatprep.mubr.f32.mxu0 0.0
        %390 = vmatmul.mubr.f32.gmra.mrb[0].mxu0 %v308
        %v391 = vpop.f32.mrb[0].mxu0
        %v392 = vadd.f32 0.0, %v391
        %v393 = vpop.f32.mrb[0].mxu0
        %394 = vdwg.mxu0
        %vm395 = vcmask 261120
        %396 = vst.msk [vmem:[%s189] sm:$0xff] %vm395, %v377
        %397 = vst.msk [vmem:[%s189 + $0x8] sm:$0xff] %vm395, %v382
        %398 = vst.msk [vmem:[%s189 + $0x10] sm:$0xff] %vm395, %v387
        %399 = vst.msk [vmem:[%s189 + $0x18] sm:$0xff] %vm395, %v392
        %s400 = scalar_lea.vmem %s167, 16 [#allocation2]
        %v401 = vld [vmem:[%s400] sm:$0xff]
        %v402 = vld [vmem:[%s400 + $0x8] sm:$0xff]
        %403 = vmatprep.subr.mxu0 0.0
        %404 = vmatpush1.msra.mxu0 %v401
        %405 = vmatprep.subr.mxu0 0.0
        %406 = vmatpush1.msra.mxu0 %v402
        %407 = vmatprep.subr.mxu0 0.0
        %408 = vmatpush1.msra.mxu0 0.0
        %409 = vmatprep.subr.mxu0 0.0
        %410 = vmatpush1.msra.mxu0 0.0
        %411 = vmatprep.subr.mxu0 0.0
        %412 = vmatpush1.msra.mxu0 0.0
        %413 = vmatprep.subr.mxu0 0.0
        %414 = vmatpush1.msra.mxu0 0.0
        %415 = vmatprep.subr.mxu0 0.0
        %416 = vmatpush1.msra.mxu0 0.0
        %417 = vmatprep.subr.mxu0 0.0
        %418 = vmatpush1.msra.mxu0 0.0
        %419 = vmatprep.subr.mxu0 0.0
        %420 = vmatpush1.msra.mxu0 0.0
        %421 = vmatprep.subr.mxu0 0.0
        %422 = vmatpush1.msra.mxu0 0.0
        %423 = vmatprep.subr.mxu0 0.0
        %424 = vmatpush1.msra.mxu0 0.0
        %425 = vmatprep.subr.mxu0 0.0
        %426 = vmatpush1.msra.mxu0 0.0
        %427 = vmatprep.subr.mxu0 0.0
        %428 = vmatpush1.msra.mxu0 0.0
        %429 = vmatprep.subr.mxu0 0.0
        %430 = vmatpush1.msra.mxu0 0.0
        %431 = vmatprep.subr.mxu0 0.0
        %432 = vmatpush1.msra.mxu0 0.0
        %433 = vmatprep.subr.mxu0 0.0
        %434 = vmatpush1.msra.mxu0 0.0
        %435 = vmatprep.subr.mxu0 0.0
        %436 = vmatpush1.msra.mxu0 0.0
        %437 = vmatprep.subr.mxu0 0.0
        %438 = vmatpush1.msra.mxu0 0.0
        %439 = vmatprep.subr.mxu0 0.0
        %440 = vmatpush1.msra.mxu0 0.0
        %441 = vmatprep.subr.mxu0 0.0
        %442 = vmatpush1.msra.mxu0 0.0
        %443 = vmatprep.subr.mxu0 0.0
        %444 = vmatpush1.msra.mxu0 0.0
        %445 = vmatprep.subr.mxu0 0.0
        %446 = vmatpush1.msra.mxu0 0.0
        %447 = vmatprep.subr.mxu0 0.0
        %448 = vmatpush1.msra.mxu0 0.0
        %449 = vmatprep.subr.mxu0 0.0
        %450 = vmatpush1.msra.mxu0 0.0
        %451 = vmatprep.subr.mxu0 0.0
        %452 = vmatpush1.msra.mxu0 0.0
        %453 = vmatprep.subr.mxu0 0.0
        %454 = vmatpush1.msra.mxu0 0.0
        %455 = vmatprep.subr.mxu0 0.0
        %456 = vmatpush1.msra.mxu0 0.0
        %457 = vmatprep.subr.mxu0 0.0
        %458 = vmatpush1.msra.mxu0 0.0
        %459 = vmatprep.subr.mxu0 0.0
        %460 = vmatpush1.msra.mxu0 0.0
        %461 = vmatprep.subr.mxu0 0.0
        %462 = vmatpush1.msra.mxu0 0.0
        %463 = vmatprep.subr.mxu0 0.0
        %464 = vmatpush1.msra.mxu0 0.0
        %465 = vmatprep.subr.mxu0 0.0
        %466 = vmatpush1.msra.mxu0 0.0
        %467 = vmatprep.mubr.f32.mxu0 0.0
        %468 = vmatmul.mubr.f32.gmra.mrb[0].mxu0 %v202
        %v469 = vpop.f32.mrb[0].mxu0
        %v470 = vadd.f32 0.0, %v469
        %v471 = vpop.f32.mrb[0].mxu0
        %472 = vmatprep.mubr.f32.mxu0 0.0
        %473 = vmatmul.mubr.f32.gmra.mrb[0].mxu0 %v205
        %v474 = vpop.f32.mrb[0].mxu0
        %v475 = vadd.f32 0.0, %v474
        %v476 = vpop.f32.mrb[0].mxu0
        %477 = vmatprep.mubr.f32.mxu0 0.0
        %478 = vmatmul.mubr.f32.gmra.mrb[0].mxu0 %v208
        %v479 = vpop.f32.mrb[0].mxu0
        %v480 = vadd.f32 0.0, %v479
        %v481 = vpop.f32.mrb[0].mxu0
        %482 = vmatprep.mubr.f32.mxu0 0.0
        %483 = vmatmul.mubr.f32.gmra.mrb[0].mxu0 %v211
        %v484 = vpop.f32.mrb[0].mxu0
        %v485 = vadd.f32 0.0, %v484
        %v486 = vpop.f32.mrb[0].mxu0
        %487 = vdwg.mxu0
        %v489 = vsel %vm200, %v470, 0
        %v492 = vsel %vm200, %v475, 0
        %v495 = vsel %vm200, %v480, 0
        %v498 = vsel %vm200, %v485, 0
        %500 = vmatprep.subr.mxu0 0.0
        %501 = vmatpush1.msra.mxu0 %v196
        %502 = vmatprep.subr.mxu0 0.0
        %503 = vmatpush1.msra.mxu0 %v197
        %504 = vmatprep.subr.mxu0 0.0
        %505 = vmatpush1.msra.mxu0 0.0
        %506 = vmatprep.subr.mxu0 0.0
        %507 = vmatpush1.msra.mxu0 0.0
        %508 = vmatprep.subr.mxu0 0.0
        %509 = vmatpush1.msra.mxu0 0.0
        %510 = vmatprep.subr.mxu0 0.0
        %511 = vmatpush1.msra.mxu0 0.0
        %512 = vmatprep.subr.mxu0 0.0
        %513 = vmatpush1.msra.mxu0 0.0
        %514 = vmatprep.subr.mxu0 0.0
        %515 = vmatpush1.msra.mxu0 0.0
        %516 = vmatprep.subr.mxu0 0.0
        %517 = vmatpush1.msra.mxu0 0.0
        %518 = vmatprep.subr.mxu0 0.0
        %519 = vmatpush1.msra.mxu0 0.0
        %520 = vmatprep.subr.mxu0 0.0
        %521 = vmatpush1.msra.mxu0 0.0
        %522 = vmatprep.subr.mxu0 0.0
        %523 = vmatpush1.msra.mxu0 0.0
        %524 = vmatprep.subr.mxu0 0.0
        %525 = vmatpush1.msra.mxu0 0.0
        %526 = vmatprep.subr.mxu0 0.0
        %527 = vmatpush1.msra.mxu0 0.0
        %528 = vmatprep.subr.mxu0 0.0
        %529 = vmatpush1.msra.mxu0 0.0
        %530 = vmatprep.subr.mxu0 0.0
        %531 = vmatpush1.msra.mxu0 0.0
        %532 = vmatprep.subr.mxu0 0.0
        %533 = vmatpush1.msra.mxu0 0.0
        %534 = vmatprep.subr.mxu0 0.0
        %535 = vmatpush1.msra.mxu0 0.0
        %536 = vmatprep.subr.mxu0 0.0
        %537 = vmatpush1.msra.mxu0 0.0
        %538 = vmatprep.subr.mxu0 0.0
        %539 = vmatpush1.msra.mxu0 0.0
        %540 = vmatprep.subr.mxu0 0.0
        %541 = vmatpush1.msra.mxu0 0.0
        %542 = vmatprep.subr.mxu0 0.0
        %543 = vmatpush1.msra.mxu0 0.0
        %544 = vmatprep.subr.mxu0 0.0
        %545 = vmatpush1.msra.mxu0 0.0
        %546 = vmatprep.subr.mxu0 0.0
        %547 = vmatpush1.msra.mxu0 0.0
        %548 = vmatprep.subr.mxu0 0.0
        %549 = vmatpush1.msra.mxu0 0.0
        %550 = vmatprep.subr.mxu0 0.0
        %551 = vmatpush1.msra.mxu0 0.0
        %552 = vmatprep.subr.mxu0 0.0
        %553 = vmatpush1.msra.mxu0 0.0
        %554 = vmatprep.subr.mxu0 0.0
        %555 = vmatpush1.msra.mxu0 0.0
        %556 = vmatprep.subr.mxu0 0.0
        %557 = vmatpush1.msra.mxu0 0.0
        %558 = vmatprep.subr.mxu0 0.0
        %559 = vmatpush1.msra.mxu0 0.0
        %560 = vmatprep.subr.mxu0 0.0
        %561 = vmatpush1.msra.mxu0 0.0
        %562 = vmatprep.subr.mxu0 0.0
        %563 = vmatpush1.msra.mxu0 0.0
        %564 = vmatprep.mubr.f32.mxu0 0.0
        %565 = vmatmul.mubr.f32.gmra.mrb[0].mxu0 %v489
        %v566 = vpop.f32.mrb[0].mxu0
        %v567 = vadd.f32 0.0, %v566
        %v568 = vpop.f32.mrb[0].mxu0
        %569 = vmatprep.mubr.f32.mxu0 0.0
        %570 = vmatmul.mubr.f32.gmra.mrb[0].mxu0 %v492
        %v571 = vpop.f32.mrb[0].mxu0
        %v572 = vadd.f32 0.0, %v571
        %v573 = vpop.f32.mrb[0].mxu0
        %574 = vmatprep.mubr.f32.mxu0 0.0
        %575 = vmatmul.mubr.f32.gmra.mrb[0].mxu0 %v495
        %v576 = vpop.f32.mrb[0].mxu0
        %v577 = vadd.f32 0.0, %v576
        %v578 = vpop.f32.mrb[0].mxu0
        %579 = vmatprep.mubr.f32.mxu0 0.0
        %580 = vmatmul.mubr.f32.gmra.mrb[0].mxu0 %v498
        %v581 = vpop.f32.mrb[0].mxu0
        %v582 = vadd.f32 0.0, %v581
        %v583 = vpop.f32.mrb[0].mxu0
        %584 = vdwg.mxu0
        %s585 = scalar_lea.vmem %s189, 32 [#allocation5]
        %586 = vst.msk [vmem:[%s585] sm:$0xff] %vm395, %v567
        %587 = vst.msk [vmem:[%s585 + $0x8] sm:$0xff] %vm395, %v572
        %588 = vst.msk [vmem:[%s585 + $0x10] sm:$0xff] %vm395, %v577
        %589 = vst.msk [vmem:[%s585 + $0x18] sm:$0xff] %vm395, %v582
        %s590 = sand.u32 %s96, 1
        %s591 = scalar_lea.sflag [#allocation4], %s590
        %s592 = sand.u32 %s96, 1
        %s593 = smul.addr %s592, 64
        %s594 = scalar_lea.vmem [#allocation5], %s593
        // Predicated region
        $region37: #{tpu_custom_call.1} parent=31 // pred_check
          %p595 = pneg %p106
        $region38: #{tpu_custom_call.1} parent=31 // pred_check_branch
          %597 = sbr.rel (%p595) target = $region40
        $region39: #{tpu_custom_call.1} parent=31 // pred_region
          %s598 = smul.u32 2, %s20
          %s600 = ssub.s32 1024, 1024
          %601 = vsyncadd %s591, %s600
          %s602 = smul.addr %s598, 4
          %s603 = smul.addr %s602, 128
          %s604 = scalar_lea.hbm %s3, %s603
          %s605 = sshll.u32 %s594, 4
          %s606 = int_to_ptr.vmem [resolvable:$true] %s605
          %611 = dma.vmem_to_hbm [thread:$0]  %s606, 1024, %s604, %s591, 128, 128, 8
        $region40: #{tpu_custom_call.1} parent=31 // pred_fallthru
          _
      $region32: #{tpu_custom_call.1} parent=5 // pred_fallthru
        _
      %p612 = scmp.le.s32.totalorder 2, %s15
      // Predicated region
      $region41: #{tpu_custom_call.1} parent=5 // pred_check
        %p613 = pneg %p612
      $region42: #{tpu_custom_call.1} parent=5 // pred_check_branch
        %615 = sbr.rel (%p613) target = $region44
      $region43: #{tpu_custom_call.1} parent=5 // pred_region
        %s616 = ssub.s32 %s15, 2
        // Predicated region
        $region45: #{tpu_custom_call.1} parent=43 // pred_check
          %p617 = pneg %p112
        $region46: #{tpu_custom_call.1} parent=43 // pred_check_branch
          %619 = sbr.rel (%p617) target = $region48
        $region47: #{tpu_custom_call.1} parent=43 // pred_region
          %s620 = sand.u32 %s97, 1
          %s621 = scalar_lea.sflag [#allocation4], %s620
          %s622 = sand.u32 %s97, 1
          %s623 = smul.addr %s622, 64
          %s624 = scalar_lea.vmem [#allocation5], %s623
          %625 = dma.done %s621, 1024
        $region48: #{tpu_custom_call.1} parent=43 // pred_fallthru
          _
      $region44: #{tpu_custom_call.1} parent=5 // pred_fallthru
        _
    $region6: #{tpu_custom_call.1} parent=1 // loop_footer
      %s19 = sadd.s32 1, %s15
    $region7: #{tpu_custom_call.1} parent=1 // loop_footer_branch
      %14 = sbr.rel target = $region3
    $region8: #{tpu_custom_call.1} parent=1 // loop_exit
      _
    %626 = vsyncpa [#allocation3], 1
    %s627 = scalar_lea.sflag [#allocation3], 1
    %628 = vsyncpa %s627, 1
    %629 = vsyncpa [#allocation4], 1
    %s630 = scalar_lea.sflag [#allocation4], 1
    %631 = vsyncpa %s630, 1

</llo_original>
